<compile_context>
chip_gen: v5e
topology: v5e:2x2
jax: 0.10.0
libtpu: 0.0.40
codegen_flags: <defaults>
</compile_context>

<pallas_src>
import jax
import jax.numpy as jnp
from jax.experimental import pallas as pl
from jax.experimental.pallas import tpu as pltpu

LANES = 128                         # TPU lane width (last-dim granularity)
MAX_LANE_ELEMS = 8192               # cap on lane-dense last dim (wide unmasked vst)
TARGET_BLOCK_BYTES = 4 * 1024 * 1024   # per-block budget; in+out double buffered
                                       # = 16 MiB resident, under all scoped limits
VMEM_LIMIT_BYTES = 32 * 1024 * 1024    # explicit scoped-VMEM budget (safe on
                                       # v5e/v6e 128 MiB and v7x 64 MiB physical)
MIN_SPLIT_BYTES = 4 * 1024 * 1024      # above this, force >=2 grid steps so both
                                       # v7x TensorCores issue DMAs


def _view_copy_kernel(x_ref, o_ref):
    # Identity copy of the current (block_rows, W) tile — the whole "compute".
    o_ref[...] = x_ref[...]


def _resolve_shape(numel, shape):
    """Replicate torch.Tensor.view shape semantics, including a single -1."""
    shape = list(shape)
    if shape.count(-1) > 1:
        raise ValueError("only one dimension can be inferred")
    known = 1
    for s in shape:
        if s != -1:
            known *= s
    if -1 in shape:
        if known == 0 or numel % known != 0:
            raise ValueError(f"shape {shape} is invalid for input of size {numel}")
        shape[shape.index(-1)] = numel // known
    else:
        if known != numel:
            raise ValueError(f"shape {shape} is invalid for input of size {numel}")
    return tuple(shape)


def _native_sublanes(itemsize):
    # dtype-native sublane tile: f32 -> 8, bf16/f16 -> 16, int8/fp8 -> 32.
    return max(8, 8 * (4 // max(1, itemsize)))


def _pick_block_rows(rows, w, itemsize, sublanes, total_bytes):
    """Pick a block height: big (amortize ~0.35us/step), sublane-aligned,
    an exact divisor of `rows` (no masked epilogue), and small enough that
    medium/large copies get >=2 grid steps (both v7x TensorCores busy)."""
    budget_rows = max(1, TARGET_BLOCK_BYTES // (w * itemsize))
    want_split = total_bytes > MIN_SPLIT_BYTES and rows >= 2 * sublanes
    max_rows = min(budget_rows, rows // 2) if want_split else min(budget_rows, rows)
    max_rows = max(max_rows, 1)

    # Prefer an exact divisor of rows that is a sublane multiple (or the full
    # extent): every grid step then has a full, unmasked tile.
    for d in range(max_rows, 0, -1):
        if rows % d == 0 and (d % sublanes == 0 or d == rows):
            return d

    # Fall back to a sublane-aligned block (masked final block), or the full
    # extent which is always legal.
    blk = (max_rows // sublanes) * sublanes
    return blk if blk >= sublanes else rows


def pallas_view(x, *shape, materialize=False):
    """Functional equivalent of View(*shape).forward(x)."""
    numel = int(x.size)
    out_shape = _resolve_shape(numel, shape)

    # A view of contiguous storage is metadata-only: the default (and fastest)
    # path is the free XLA reshape — zero HBM traffic.  The Pallas copy is only
    # taken when explicitly requested and the size tiles cleanly into lanes.
    if (not materialize) or numel == 0 or numel % LANES != 0:
        return jnp.reshape(x, out_shape)

    itemsize = jnp.dtype(x.dtype).itemsize
    sublanes = _native_sublanes(itemsize)
    total_bytes = numel * itemsize

    # Lane-dense layout: largest multiple of 128 (capped) dividing numel as the
    # last dim so stores lower to wide unmasked vst.
    w = LANES
    for k in range(min(numel, MAX_LANE_ELEMS) // LANES, 0, -1):
        cand = k * LANES
        if numel % cand == 0:
            w = cand
            break
    rows = numel // w

    block_rows = _pick_block_rows(rows, w, itemsize, sublanes, total_bytes)
    grid = (pl.cdiv(rows, block_rows),)

    flat2d = jnp.reshape(x, (rows, w))        # metadata-only for contiguous x

    # TODO(synk): an HBM->HBM chunked pltpu.make_async_copy variant would skip
    # the VMEM round-trip entirely and be VMEM-budget independent.
    copied = pl.pallas_call(
        _view_copy_kernel,
        out_shape=jax.ShapeDtypeStruct((rows, w), flat2d.dtype),
        grid_spec=pltpu.PrefetchScalarGridSpec(
            num_scalar_prefetch=0,
            grid=grid,
            in_specs=[pl.BlockSpec((block_rows, w), lambda i: (i, 0))],
            out_specs=pl.BlockSpec((block_rows, w), lambda i: (i, 0)),
        ),
        # NOTE: no input_output_aliases — aliasing a non-donated input makes
        # XLA insert a defensive full-buffer copy (doubling HBM traffic).
        cost_estimate=pl.CostEstimate(
            flops=0, transcendentals=0, bytes_accessed=2 * total_bytes),
        compiler_params=pltpu.CompilerParams(
            dimension_semantics=("parallel",),   # sharded across TCs on v7x
            vmem_limit_bytes=VMEM_LIMIT_BYTES,
        ),
    )(flat2d)

    # Metadata-only glue: apply the requested view shape (no slicing, no pad).
    return jnp.reshape(copied, out_shape)


class View:
    """JAX/Pallas mirror of the PyTorch View module (no parameters)."""

    def __init__(self, *shape, materialize=False):
        self.shape = shape
        self.materialize = materialize

    def __call__(self, x):
        return pallas_view(x, *self.shape, materialize=self.materialize)


if __name__ == "__main__":
    key = jax.random.PRNGKey(0)
    # Small NCHW-like input, consistent with a decoder feature map.
    x = jax.random.normal(key, (2, 4, 16, 16), dtype=jnp.float32)

    # Typical decoder usage: flatten spatial/channel dims -> (batch, -1).
    # Default path: free metadata-only view (the recommended production path).
    view = View(2, -1)
    y = jax.block_until_ready(view(x))
    y_ref = jnp.reshape(x, (2, -1))
    assert y.shape == (2, 4 * 16 * 16), y.shape
    assert y.dtype == x.dtype
    assert bool(jnp.all(y == y_ref))

    # Explicit full shape (like View(B, C*H, W)), free path.
    y2 = jax.block_until_ready(View(2, 64, 16)(x))
    assert y2.shape == (2, 64, 16)
    assert bool(jnp.all(y2 == jnp.reshape(x, (2, 64, 16))))

    # Materialized Pallas copy at the same small shape (exercises the kernel).
    ym = jax.block_until_ready(pallas_view(x, 2, -1, materialize=True))
    assert ym.shape == (2, 1024) and ym.dtype == x.dtype
    assert bool(jnp.all(ym == y_ref))

    # bf16 materialized path (dtype-aware tiling, still lane-dense).
    xb = jax.random.normal(key, (4, 8, 32, 32), dtype=jnp.bfloat16)
    yb = jax.block_until_ready(View(4, -1, materialize=True)(xb))
    assert yb.shape == (4, 8 * 32 * 32) and yb.dtype == jnp.bfloat16
    assert bool(jnp.all(yb == jnp.reshape(xb, (4, -1))))

    # Larger f32 tensor (> MIN_SPLIT_BYTES) exercises the multi-step parallel
    # grid so both v7x TensorCores participate.
    xl = jax.random.normal(key, (4, 32, 128, 128), dtype=jnp.float32)
    yl = jax.block_until_ready(pallas_view(xl, 4, -1, materialize=True))
    assert yl.shape == (4, 32 * 128 * 128)
    assert bool(jnp.all(yl == jnp.reshape(xl, (4, -1))))

    # Ragged (non-128-multiple) size exercises the metadata-only fallback.
    xr = jax.random.normal(key, (2, 3, 5), dtype=jnp.float32)
    yr = jax.block_until_ready(View(6, 5, materialize=True)(xr))
    assert yr.shape == (6, 5)
    assert bool(jnp.all(yr == jnp.reshape(xr, (6, 5))))

    print("KERNEL_OK")
</pallas_src>

<mosaic_0001>
module attributes {stable_mosaic.version = 11 : i64} {
  func.func @_view_copy_kernel(%arg0: i32, %arg1: memref<1x2048xf32, #tpu.memory_space<vmem>>, %arg2: memref<1x2048xf32, #tpu.memory_space<vmem>>) attributes {dimension_semantics = [#tpu.dimension_semantics<parallel>], iteration_bounds = array<i64: 1>, scalar_prefetch = 0 : i64, scratch_operands = 0 : i64, tpu.core_type = #tpu.core_type<tc>, window_params = [{transform_indices = @transform_0, window_bounds = array<i64: 1, 2048>}, {transform_indices = @transform_1, window_bounds = array<i64: 1, 2048>}]} {
    %c0 = arith.constant 0 : index
    %c0_0 = arith.constant 0 : index
    %0 = vector.load %arg1[%c0, %c0_0] : memref<1x2048xf32, #tpu.memory_space<vmem>>, vector<1x2048xf32>
    %c0_1 = arith.constant 0 : index
    %c0_2 = arith.constant 0 : index
    %1 = vector.load %arg2[%c0_1, %c0_2] : memref<1x2048xf32, #tpu.memory_space<vmem>>, vector<1x2048xf32>
    tpu.vector_store %arg2[%c0_1, %c0_2], %0 {strides = array<i32>} : memref<1x2048xf32, #tpu.memory_space<vmem>>, vector<1x2048xf32>,
    return
  }
  func.func @transform_0(%arg0: i32) -> (i32, i32) {
    %c0_i32 = arith.constant 0 : i32
    %c0_i32_0 = arith.constant 0 : i32
    return %arg0, %c0_i32 : i32, i32
  }
  func.func @transform_1(%arg0: i32) -> (i32, i32) {
    %c0_i32 = arith.constant 0 : i32
    %c0_i32_0 = arith.constant 0 : i32
    return %arg0, %c0_i32 : i32, i32
  }
}

</mosaic_0001>

<llo_original>
// kernel: tpu_custom_call.1
$region0: #{tpu_custom_call.1}
  #allocation0 [shape = 'u32[]', space=smem, size = 0x4, offset = 0x4, fixed_abs, tag = 'smem constant byte address 0x4 - core index']
  #allocation1 [shape = 'u32[72,128]{1,0:T(1,128)}', space=vmem, size = 0x9000, scoped, tag = 'internal scratch']
  %s0 = inlined_call_operand.hbm [shape: f32[1,2048], index: 0, kind: input, shape index: {}]
  %s1 = inlined_call_operand.hbm [shape: f32[1,2048], index: 1, kind: output, shape index: {}]
  %s2 = sld [smem:[#allocation0]]
  $region18: #{tpu_custom_call.1} parent=0
    _
  %s4 = ssub.s32 1, %s2
  %s5 = scalar_select 0, %s4, %s2
  $region1: #{tpu_custom_call.1} parent=0
    #allocation2 [shape = 'u8[8192]{0}', space=vmem, size = 0x2000, scoped, tag = 'input window, operand 0, single buffered']
    #allocation3 [shape = 's32[1]{0}', space=sflag, size = 0x4, scoped, tag = 'scoped memory for tpu_custom_call.1']
    #allocation4 [shape = 's32[1]{0}', space=sflag, size = 0x4, scoped, tag = 'scoped memory for tpu_custom_call.1']
    #allocation5 [shape = 'u8[8192]{0}', space=vmem, size = 0x2000, scoped, tag = 'output window, operand 0, single buffered']
    %6 = vsyncpa [#allocation3], 0
    %7 = vsyncpa [#allocation4], 0
    // Predicated region
    $region2: #{tpu_custom_call.1} parent=1 // pred_check
      _
    $region3: #{tpu_custom_call.1} parent=1 // pred_check_branch
      %9 = sbr.rel (0) target = $region5
    $region4: #{tpu_custom_call.1} parent=1 // pred_region
      %11 = vsyncadd [#allocation3], 0
      %s13 = sshll.u32 %s0, 4
      %s14 = int_to_ptr.hbm [resolvable:$true] %s13
      %s15 = sshll.u32 [#allocation2], 4
      %s16 = int_to_ptr.vmem [resolvable:$true] %s15
      %18 = dma.hbm_to_vmem [thread:$0]  %s14, 256, %s16, [#allocation3]
    $region5: #{tpu_custom_call.1} parent=1 // pred_fallthru
      _
    // Predicated region
    $region6: #{tpu_custom_call.1} parent=1 // pred_check
      _
    $region7: #{tpu_custom_call.1} parent=1 // pred_check_branch
      %20 = sbr.rel (0) target = $region9
    $region8: #{tpu_custom_call.1} parent=1 // pred_region
      %22 = dma.done [#allocation3], 256
    $region9: #{tpu_custom_call.1} parent=1 // pred_fallthru
      _
    %v23 = vld [vmem:[#allocation2] sm:$0xff]
    %v24 = vld [vmem:[#allocation2 + $0x8] sm:$0xff]
    %25 = vst [vmem:[#allocation5] sm:$0xff] %v23
    %26 = vst [vmem:[#allocation5 + $0x8] sm:$0xff] %v24
    // Predicated region
    $region10: #{tpu_custom_call.1} parent=1 // pred_check
      _
    $region11: #{tpu_custom_call.1} parent=1 // pred_check_branch
      %28 = sbr.rel (0) target = $region13
    $region12: #{tpu_custom_call.1} parent=1 // pred_region
      %30 = vsyncadd [#allocation4], 0
      %s32 = sshll.u32 [#allocation5], 4
      %s33 = int_to_ptr.vmem [resolvable:$true] %s32
      %s34 = sshll.u32 %s1, 4
      %s35 = int_to_ptr.hbm [resolvable:$true] %s34
      %37 = dma.vmem_to_hbm [thread:$0]  %s33, 256, %s35, [#allocation4]
    $region13: #{tpu_custom_call.1} parent=1 // pred_fallthru
      _
    // Predicated region
    $region14: #{tpu_custom_call.1} parent=1 // pred_check
      _
    $region15: #{tpu_custom_call.1} parent=1 // pred_check_branch
      %39 = sbr.rel (0) target = $region17
    $region16: #{tpu_custom_call.1} parent=1 // pred_region
      %41 = dma.done [#allocation4], 256
    $region17: #{tpu_custom_call.1} parent=1 // pred_fallthru
      _
    %42 = vsyncpa [#allocation3], 1
    %43 = vsyncpa [#allocation4], 1

</llo_original>
